<compile_context>
chip_gen: v6e
topology: v6e:2x2x1
jax: 0.10.0
libtpu: 0.0.40
codegen_flags: <defaults>
</compile_context>

<pallas_src>
import numpy as np
import jax
import jax.numpy as jnp
from jax.experimental import pallas as pl
from jax.experimental.pallas import tpu as pltpu

HIDDEN = 32
LANE = 128


def _round_up(x, m):
    return ((x + m - 1) // m) * m


def mlp_kernel(x_ref, w1_ref, b1_ref, w2_ref, b2_ref, w3_ref, b3_ref, o_ref):
    """One batch tile, feature-major.

    x_ref : (D, TB)          activations, batch on lanes
    w1_ref: (32, D)  b1_ref: (32, 1)
    w2_ref: (32, 32) b2_ref: (32, 1)
    w3_ref: (32, 1)  b3_ref: (1, 1)     (w3 pre-transposed for the VPU/XLU reduction)
    o_ref : (1, TB)          lane-dense output slab
    """
    x = x_ref[...]                                                        # (D, TB)
    # Layer 1: MXU matmul (K = D), bias broadcast along lanes, ReLU on VPU.
    h1 = jnp.dot(w1_ref[...], x, preferred_element_type=jnp.float32) + b1_ref[...]
    h1 = jnp.maximum(h1, 0.0)                                             # (32, TB)
    # Layer 2: MXU matmul (32x32), bias + ReLU.
    h2 = jnp.dot(w2_ref[...], h1, preferred_element_type=jnp.float32) + b2_ref[...]
    h2 = jnp.maximum(h2, 0.0)                                             # (32, TB)
    # Layer 3 (32 -> 1): elementwise multiply (VPU) + sublane reduce (XLU),
    # keeping the MXU free of a degenerate N=1 matmul.
    o_ref[...] = jnp.sum(h2 * w3_ref[...], axis=0, keepdims=True) + b3_ref[...]


def padded_embedding_forward(x, params, tile_b=2048):
    """x: (B, D) float32 row-major activations. Returns (B, 1) float32."""
    B, D = x.shape
    w1, b1 = params["w1"], params["b1"]        # (32, D), (32, 1)
    w2, b2 = params["w2"], params["b2"]        # (32, 32), (32, 1)
    w3, b3 = params["w3"], params["b3"]        # (32, 1),  (1, 1)

    # Batch tile: lane-aligned, large enough to amortize the ~0.35 us per-step grid
    # overhead, small enough that the double-buffered x tile + activations stay far
    # under VMEM limits on every chip generation.
    TB = min(tile_b, _round_up(B, LANE))
    Bp = _round_up(B, TB)
    grid = (Bp // TB,)

    # Feature-major, batch on lanes; zero-pad the batch (padded columns are discarded
    # on the way out -- each output column depends only on its own input column).
    x_t = jnp.zeros((D, Bp), jnp.float32).at[:, :B].set(x.T)

    weight_bytes = 4 * (w1.size + b1.size + w2.size + b2.size + w3.size + b3.size)
    cost = pl.CostEstimate(
        flops=2 * Bp * (D * HIDDEN + HIDDEN * HIDDEN + HIDDEN),
        transcendentals=0,
        bytes_accessed=4 * (D * Bp + Bp) + weight_bytes,
    )

    # Weights/biases: same block index at every grid step -> DMA'd once, VMEM-resident.
    resident = lambda a: pl.BlockSpec(a.shape, lambda i: (0, 0))

    out = pl.pallas_call(
        mlp_kernel,
        out_shape=jax.ShapeDtypeStruct((1, Bp), jnp.float32),
        grid=grid,
        in_specs=[
            pl.BlockSpec((D, TB), lambda i: (0, i)),   # activations: tiled over batch
            resident(w1), resident(b1),
            resident(w2), resident(b2),
            resident(w3), resident(b3),
        ],
        out_specs=pl.BlockSpec((1, TB), lambda i: (0, i)),
        compiler_params=pltpu.CompilerParams(
            dimension_semantics=("parallel",),          # v7x: shard tiles across 2 TCs
        ),
        cost_estimate=cost,
    )(x_t, w1, b1, w2, b2, w3, b3)

    return out[0, :B].reshape(B, 1)


def init_params(key, in_features, hidden=HIDDEN):
    """nn.Linear-style init, stored in the kernel's feature-major layout."""
    ks = jax.random.split(key, 6)

    def linear(kw, kb, fan_in, fan_out):
        bound = 1.0 / np.sqrt(fan_in)
        w = jax.random.uniform(kw, (fan_out, fan_in), jnp.float32, -bound, bound)
        b = jax.random.uniform(kb, (fan_out, 1), jnp.float32, -bound, bound)
        return w, b

    w1, b1 = linear(ks[0], ks[1], in_features, hidden)     # (32, D), (32, 1)
    w2, b2 = linear(ks[2], ks[3], hidden, hidden)           # (32, 32), (32, 1)
    w3, b3 = linear(ks[4], ks[5], hidden, 1)                # (1, 32),  (1, 1)
    return {"w1": w1, "b1": b1, "w2": w2, "b2": b2,
            "w3": w3.T, "b3": b3}                           # w3 stored as (32, 1)


def reference_forward(x, p):
    """Plain-JAX reference with standard (batch, features) math."""
    h1 = jnp.maximum(x @ p["w1"].T + p["b1"].T, 0.0)
    h2 = jnp.maximum(h1 @ p["w2"].T + p["b2"].T, 0.0)
    return h2 @ p["w3"] + p["b3"]           # w3 already stored as (32, 1)


# TODO(synk): state_transform / action_transform / inverse_action_transform are
# host-side automaton bookkeeping (numpy + Python control flow), not tensor ops, so
# they have no Pallas equivalent and are intentionally not implemented as kernels.


if __name__ == "__main__":
    # in_shape = (2 lanes, horizon=5) -> prod = 10 input features (state_transform
    # flattens a (num_lanes, horizon) observation).
    in_shape = (2, 5)
    in_features = int(np.prod(in_shape))
    batch = 8

    key = jax.random.PRNGKey(0)
    kx, kp = jax.random.split(key)
    x = jax.random.normal(kx, (batch, in_features), dtype=jnp.float32)
    params = init_params(kp, in_features)

    # Jit the wrapper so the host-side transpose/pad fuses into the same XLA program
    # as the pallas_call (no extra round trips).
    fwd = jax.jit(padded_embedding_forward)

    out = fwd(x, params)
    out = jax.block_until_ready(out)

    ref = reference_forward(x, params)
    assert out.shape == (batch, 1)
    np.testing.assert_allclose(np.asarray(out), np.asarray(ref), rtol=1e-5, atol=1e-5)

    print("KERNEL_OK")
</pallas_src>

<mosaic_0001>
module attributes {stable_mosaic.version = 11 : i64} {
  func.func @mlp_kernel(%arg0: i32, %arg1: memref<10x128xf32, #tpu.memory_space<vmem>>, %arg2: memref<32x10xf32, #tpu.memory_space<vmem>>, %arg3: memref<32x1xf32, #tpu.memory_space<vmem>>, %arg4: memref<32x32xf32, #tpu.memory_space<vmem>>, %arg5: memref<32x1xf32, #tpu.memory_space<vmem>>, %arg6: memref<32x1xf32, #tpu.memory_space<vmem>>, %arg7: memref<1x1xf32, #tpu.memory_space<vmem>>, %arg8: memref<1x128xf32, #tpu.memory_space<vmem>>) attributes {dimension_semantics = [#tpu.dimension_semantics<parallel>], iteration_bounds = array<i64: 1>, scalar_prefetch = 0 : i64, scratch_operands = 0 : i64, tpu.core_type = #tpu.core_type<tc>, window_params = [{transform_indices = @transform_0, window_bounds = array<i64: 10, 128>}, {pipeline_mode = #tpu.pipeline_mode<synchronous>, transform_indices = @transform_1, window_bounds = array<i64: 32, 10>}, {pipeline_mode = #tpu.pipeline_mode<synchronous>, transform_indices = @transform_2, window_bounds = array<i64: 32, 1>}, {pipeline_mode = #tpu.pipeline_mode<synchronous>, transform_indices = @transform_3, window_bounds = array<i64: 32, 32>}, {pipeline_mode = #tpu.pipeline_mode<synchronous>, transform_indices = @transform_4, window_bounds = array<i64: 32, 1>}, {pipeline_mode = #tpu.pipeline_mode<synchronous>, transform_indices = @transform_5, window_bounds = array<i64: 32, 1>}, {pipeline_mode = #tpu.pipeline_mode<synchronous>, transform_indices = @transform_6, window_bounds = array<i64: 1, 1>}, {transform_indices = @transform_7, window_bounds = array<i64: 1, 128>}]} {
    %c0 = arith.constant 0 : index
    %c0_0 = arith.constant 0 : index
    %0 = vector.load %arg1[%c0, %c0_0] : memref<10x128xf32, #tpu.memory_space<vmem>>, vector<10x128xf32>
    %c0_1 = arith.constant 0 : index
    %c0_2 = arith.constant 0 : index
    %1 = vector.load %arg2[%c0_1, %c0_2] : memref<32x10xf32, #tpu.memory_space<vmem>>, vector<32x10xf32>
    %cst = arith.constant dense<0.000000e+00> : vector<32x128xf32>
    %2 = tpu.matmul %1, %0, %cst {dimension_numbers = #tpu.dot_dimension_numbers<[1], [0], [0], [1], [0, 0, 1, 1], [], []>} : vector<32x10xf32>, vector<10x128xf32>, vector<32x128xf32> -> vector<32x128xf32>
    %c0_3 = arith.constant 0 : index
    %c0_4 = arith.constant 0 : index
    %3 = vector.load %arg3[%c0_3, %c0_4] : memref<32x1xf32, #tpu.memory_space<vmem>>, vector<32x1xf32>
    %4 = vector.broadcast %3 : vector<32x1xf32> to vector<32x128xf32>
    %5 = arith.addf %2, %4 : vector<32x128xf32>
    %cst_5 = arith.constant 0.000000e+00 : f32
    %6 = vector.broadcast %cst_5 : f32 to vector<32x128xf32>
    %7 = arith.maximumf %5, %6 : vector<32x128xf32>
    %c0_6 = arith.constant 0 : index
    %c0_7 = arith.constant 0 : index
    %8 = vector.load %arg4[%c0_6, %c0_7] : memref<32x32xf32, #tpu.memory_space<vmem>>, vector<32x32xf32>
    %cst_8 = arith.constant dense<0.000000e+00> : vector<32x128xf32>
    %9 = tpu.matmul %8, %7, %cst_8 {dimension_numbers = #tpu.dot_dimension_numbers<[1], [0], [0], [1], [0, 0, 1, 1], [], []>} : vector<32x32xf32>, vector<32x128xf32>, vector<32x128xf32> -> vector<32x128xf32>
    %c0_9 = arith.constant 0 : index
    %c0_10 = arith.constant 0 : index
    %10 = vector.load %arg5[%c0_9, %c0_10] : memref<32x1xf32, #tpu.memory_space<vmem>>, vector<32x1xf32>
    %11 = vector.broadcast %10 : vector<32x1xf32> to vector<32x128xf32>
    %12 = arith.addf %9, %11 : vector<32x128xf32>
    %cst_11 = arith.constant 0.000000e+00 : f32
    %13 = vector.broadcast %cst_11 : f32 to vector<32x128xf32>
    %14 = arith.maximumf %12, %13 : vector<32x128xf32>
    %c0_12 = arith.constant 0 : index
    %c0_13 = arith.constant 0 : index
    %15 = vector.load %arg6[%c0_12, %c0_13] : memref<32x1xf32, #tpu.memory_space<vmem>>, vector<32x1xf32>
    %16 = vector.broadcast %15 : vector<32x1xf32> to vector<32x128xf32>
    %17 = arith.mulf %14, %16 : vector<32x128xf32>
    %cst_14 = arith.constant dense<0.000000e+00> : vector<128xf32>
    %18 = vector.multi_reduction <add>, %17, %cst_14 [0] : vector<32x128xf32> to vector<128xf32>
    %19 = vector.shape_cast %18 : vector<128xf32> to vector<1x128xf32>
    %c0_15 = arith.constant 0 : index
    %c0_16 = arith.constant 0 : index
    %20 = vector.load %arg7[%c0_15, %c0_16] : memref<1x1xf32, #tpu.memory_space<vmem>>, vector<1x1xf32>
    %21 = vector.broadcast %20 : vector<1x1xf32> to vector<1x128xf32>
    %22 = arith.addf %19, %21 : vector<1x128xf32>
    %c0_17 = arith.constant 0 : index
    %c0_18 = arith.constant 0 : index
    %23 = vector.load %arg8[%c0_17, %c0_18] : memref<1x128xf32, #tpu.memory_space<vmem>>, vector<1x128xf32>
    tpu.vector_store %arg8[%c0_17, %c0_18], %22 {strides = array<i32>} : memref<1x128xf32, #tpu.memory_space<vmem>>, vector<1x128xf32>,
    return
  }
  func.func @transform_0(%arg0: i32) -> (i32, i32) {
    %c0_i32 = arith.constant 0 : i32
    %c0_i32_0 = arith.constant 0 : i32
    return %c0_i32, %arg0 : i32, i32
  }
  func.func @transform_1(%arg0: i32) -> (i32, i32) {
    %c0_i32 = arith.constant 0 : i32
    %c0_i32_0 = arith.constant 0 : i32
    %c0_i32_1 = arith.constant 0 : i32
    return %c0_i32, %c0_i32_0 : i32, i32
  }
  func.func @transform_2(%arg0: i32) -> (i32, i32) {
    %c0_i32 = arith.constant 0 : i32
    %c0_i32_0 = arith.constant 0 : i32
    %c0_i32_1 = arith.constant 0 : i32
    return %c0_i32, %c0_i32_0 : i32, i32
  }
  func.func @transform_3(%arg0: i32) -> (i32, i32) {
    %c0_i32 = arith.constant 0 : i32
    %c0_i32_0 = arith.constant 0 : i32
    %c0_i32_1 = arith.constant 0 : i32
    return %c0_i32, %c0_i32_0 : i32, i32
  }
  func.func @transform_4(%arg0: i32) -> (i32, i32) {
    %c0_i32 = arith.constant 0 : i32
    %c0_i32_0 = arith.constant 0 : i32
    %c0_i32_1 = arith.constant 0 : i32
    return %c0_i32, %c0_i32_0 : i32, i32
  }
  func.func @transform_5(%arg0: i32) -> (i32, i32) {
    %c0_i32 = arith.constant 0 : i32
    %c0_i32_0 = arith.constant 0 : i32
    %c0_i32_1 = arith.constant 0 : i32
    return %c0_i32, %c0_i32_0 : i32, i32
  }
  func.func @transform_6(%arg0: i32) -> (i32, i32) {
    %c0_i32 = arith.constant 0 : i32
    %c0_i32_0 = arith.constant 0 : i32
    %c0_i32_1 = arith.constant 0 : i32
    return %c0_i32, %c0_i32_0 : i32, i32
  }
  func.func @transform_7(%arg0: i32) -> (i32, i32) {
    %c0_i32 = arith.constant 0 : i32
    %c0_i32_0 = arith.constant 0 : i32
    return %c0_i32, %arg0 : i32, i32
  }
}

</mosaic_0001>

<llo_original>
// kernel: padded_embedding_forward.1
$region0: #{padded_embedding_forward.1}
  #allocation0 [shape = 'u32[]', space=smem, size = 0x4, offset = 0x4, fixed_abs, tag = 'smem constant byte address 0x4 - core index']
  #allocation1 [shape = 'u32[144,128]{1,0:T(1,128)}', space=vmem, size = 0x12000, scoped, tag = 'internal scratch']
  #allocation2 [shape = 'f32[1,1]{1,0:T(1,128)S(1)}', space=vmem, size = 0x200, scoped, tag = 'scoped memory for padded_embedding_forward.1']
  %s0 = inlined_call_operand.vmem [shape: f32[10,128], index: 0, kind: input, shape index: {}]
  %s1 = inlined_call_operand.vmem [shape: f32[32,10], index: 1, kind: input, shape index: {}]
  %s2 = inlined_call_operand.vmem [shape: f32[32,1], index: 2, kind: input, shape index: {}]
  %s3 = inlined_call_operand.vmem [shape: f32[32,32], index: 3, kind: input, shape index: {}]
  %s4 = inlined_call_operand.vmem [shape: f32[32,1], index: 4, kind: input, shape index: {}]
  %s5 = inlined_call_operand.vmem [shape: f32[32,1], index: 5, kind: input, shape index: {}]
  %s6 = inlined_call_operand.<no memory space> [shape: f32[1,1], index: 6, kind: input, shape index: {}]
  %s7 = inlined_call_operand.vmem [shape: f32[1,128], index: 7, kind: output, shape index: {}]
  %s8 = sld [smem:[#allocation0]]
  $region38: #{padded_embedding_forward.1} parent=0
    _
  %s10 = ssub.s32 1, %s8
  %s11 = scalar_select 0, %s10, %s8
  %v12 = vstv %s6
  %13 = vst [vmem:[#allocation2] sm:$0x1] %v12
  // Predicated region
  $region2: #{padded_embedding_forward.1} parent=0 // pred_check
    _
  $region3: #{padded_embedding_forward.1} parent=0 // pred_check_branch
    %15 = sbr.rel (0) target = $region5
  $region4: #{padded_embedding_forward.1} parent=0 // pred_region
    _
  $region5: #{padded_embedding_forward.1} parent=0 // pred_fallthru
    _
  // Predicated region
  $region6: #{padded_embedding_forward.1} parent=0 // pred_check
    _
  $region7: #{padded_embedding_forward.1} parent=0 // pred_check_branch
    %17 = sbr.rel (0) target = $region9
  $region8: #{padded_embedding_forward.1} parent=0 // pred_region
    _
  $region9: #{padded_embedding_forward.1} parent=0 // pred_fallthru
    _
  // Predicated region
  $region10: #{padded_embedding_forward.1} parent=0 // pred_check
    _
  $region11: #{padded_embedding_forward.1} parent=0 // pred_check_branch
    %19 = sbr.rel (0) target = $region13
  $region12: #{padded_embedding_forward.1} parent=0 // pred_region
    _
  $region13: #{padded_embedding_forward.1} parent=0 // pred_fallthru
    _
  // Predicated region
  $region14: #{padded_embedding_forward.1} parent=0 // pred_check
    _
  $region15: #{padded_embedding_forward.1} parent=0 // pred_check_branch
    %21 = sbr.rel (0) target = $region17
  $region16: #{padded_embedding_forward.1} parent=0 // pred_region
    _
  $region17: #{padded_embedding_forward.1} parent=0 // pred_fallthru
    _
  // Predicated region
  $region18: #{padded_embedding_forward.1} parent=0 // pred_check
    _
  $region19: #{padded_embedding_forward.1} parent=0 // pred_check_branch
    %23 = sbr.rel (0) target = $region21
  $region20: #{padded_embedding_forward.1} parent=0 // pred_region
    _
  $region21: #{padded_embedding_forward.1} parent=0 // pred_fallthru
    _
  // Predicated region
  $region22: #{padded_embedding_forward.1} parent=0 // pred_check
    _
  $region23: #{padded_embedding_forward.1} parent=0 // pred_check_branch
    %25 = sbr.rel (0) target = $region25
  $region24: #{padded_embedding_forward.1} parent=0 // pred_region
    _
  $region25: #{padded_embedding_forward.1} parent=0 // pred_fallthru
    _
  // Predicated region
  $region26: #{padded_embedding_forward.1} parent=0 // pred_check
    _
  $region27: #{padded_embedding_forward.1} parent=0 // pred_check_branch
    %27 = sbr.rel (0) target = $region29
  $region28: #{padded_embedding_forward.1} parent=0 // pred_region
    _
  $region29: #{padded_embedding_forward.1} parent=0 // pred_fallthru
    _
  %v28 = vld [vmem:[%s0] sm:$0xff]
  %v29 = vld [vmem:[%s0 + $0x8] sm:$0x3]
  %v30 = vld [vmem:[%s1] sm:$0xff]
  %v31 = vld [vmem:[%s1 + $0x8] sm:$0xff]
  %v32 = vld [vmem:[%s1 + $0x10] sm:$0xff]
  %v33 = vld [vmem:[%s1 + $0x18] sm:$0xff]
  %v34 = vld [vmem:[%s2] sm:$0xff]
  %v35 = vld [vmem:[%s2 + $0x8] sm:$0xff]
  %v36 = vld [vmem:[%s2 + $0x10] sm:$0xff]
  %v37 = vld [vmem:[%s2 + $0x18] sm:$0xff]
  %39 = vset.pattern.permute.xlu0 0
  %40 = vperm.xlu0 %39, %v34
  %v41 = vpop.permute.xlu0 %40
  %44 = vset.pattern.permute.xlu0 0
  %45 = vperm.xlu0 %44, %v35
  %v46 = vpop.permute.xlu0 %45
  %49 = vset.pattern.permute.xlu0 0
  %50 = vperm.xlu0 %49, %v36
  %v51 = vpop.permute.xlu0 %50
  %54 = vset.pattern.permute.xlu0 0
  %55 = vperm.xlu0 %54, %v37
  %v56 = vpop.permute.xlu0 %55
  %vm58 = vcmask 80896
  %v60 = vsel %vm58, %v30, 0
  %v63 = vsel %vm58, %v31, 0
  %v66 = vsel %vm58, %v32, 0
  %v69 = vsel %vm58, %v33, 0
  %vm71 = vcmask 1041408
  %v73 = vsel %vm71, %v29, 0
  %75 = vmatprep.subr.mxu0 0.0
  %76 = vmatpush1.msra.mxu0 0.0
  %77 = vmatprep.subr.mxu0 0.0
  %78 = vmatpush1.msra.mxu0 0.0
  %79 = vmatprep.subr.mxu0 0.0
  %80 = vmatpush1.msra.mxu0 0.0
  %81 = vmatprep.subr.mxu0 0.0
  %82 = vmatpush1.msra.mxu0 0.0
  %83 = vmatprep.subr.mxu0 0.0
  %84 = vmatpush1.msra.mxu0 0.0
  %85 = vmatprep.subr.mxu0 0.0
  %86 = vmatpush1.msra.mxu0 0.0
  %87 = vmatprep.subr.mxu0 0.0
  %88 = vmatpush1.msra.mxu0 0.0
  %89 = vmatprep.subr.mxu0 0.0
  %90 = vmatpush1.msra.mxu0 0.0
  %91 = vmatprep.subr.mxu0 0.0
  %92 = vmatpush1.msra.mxu0 0.0
  %93 = vmatprep.subr.mxu0 0.0
  %94 = vmatpush1.msra.mxu0 0.0
  %95 = vmatprep.subr.mxu0 0.0
  %96 = vmatpush1.msra.mxu0 0.0
  %97 = vmatprep.subr.mxu0 0.0
  %98 = vmatpush1.msra.mxu0 0.0
  %99 = vmatprep.subr.mxu0 0.0
  %100 = vmatpush1.msra.mxu0 0.0
  %101 = vmatprep.subr.mxu0 0.0
  %102 = vmatpush1.msra.mxu0 0.0
  %103 = vmatprep.subr.mxu0 0.0
  %104 = vmatpush1.msra.mxu0 %v73
  %105 = vmatprep.subr.mxu0 0.0
  %106 = vmatpush1.msra.mxu0 %v28
  %107 = vmatprep.subr.mxu0 0.0
  %108 = vmatpush2.msra.mxu0 0.0
  %109 = vmatprep.subr.mxu0 0.0
  %110 = vmatpush2.msra.mxu0 0.0
  %111 = vmatprep.subr.mxu0 0.0
  %112 = vmatpush2.msra.mxu0 0.0
  %113 = vmatprep.subr.mxu0 0.0
  %114 = vmatpush2.msra.mxu0 0.0
  %115 = vmatprep.subr.mxu0 0.0
  %116 = vmatpush2.msra.mxu0 0.0
  %117 = vmatprep.subr.mxu0 0.0
  %118 = vmatpush2.msra.mxu0 0.0
  %119 = vmatprep.subr.mxu0 0.0
  %120 = vmatpush2.msra.mxu0 0.0
  %121 = vmatprep.subr.mxu0 0.0
  %122 = vmatpush2.msra.mxu0 0.0
  %123 = vmatprep.subr.mxu0 0.0
  %124 = vmatpush2.msra.mxu0 0.0
  %125 = vmatprep.subr.mxu0 0.0
  %126 = vmatpush2.msra.mxu0 0.0
  %127 = vmatprep.subr.mxu0 0.0
  %128 = vmatpush2.msra.mxu0 0.0
  %129 = vmatprep.subr.mxu0 0.0
  %130 = vmatpush2.msra.mxu0 0.0
  %131 = vmatprep.subr.mxu0 0.0
  %132 = vmatpush2.msra.mxu0 0.0
  %133 = vmatprep.subr.mxu0 0.0
  %134 = vmatpush2.msra.mxu0 0.0
  %135 = vmatprep.subr.mxu0 0.0
  %136 = vmatpush2.msra.mxu0 0.0
  %137 = vmatprep.subr.mxu0 0.0
  %138 = vmatpush2.msra.mxu0 0.0
  %139 = vmatprep.mubr.f32.mxu0 0.0
  %140 = vmatmul.mubr.f32.gmra.mxu0 %v60
  %v141 = vpop.f32.mrf.mxu0
  %v142 = vadd.f32 %v41, %v141
  %v143 = vpop.f32.mrf.mxu0
  %144 = vmatprep.mubr.f32.mxu0 0.0
  %145 = vmatmul.mubr.f32.gmra.mxu0 %v63
  %v146 = vpop.f32.mrf.mxu0
  %v147 = vadd.f32 %v46, %v146
  %v148 = vpop.f32.mrf.mxu0
  %149 = vmatprep.mubr.f32.mxu0 0.0
  %150 = vmatmul.mubr.f32.gmra.mxu0 %v66
  %v151 = vpop.f32.mrf.mxu0
  %v152 = vadd.f32 %v51, %v151
  %v153 = vpop.f32.mrf.mxu0
  %154 = vmatprep.mubr.f32.mxu0 0.0
  %155 = vmatmul.mubr.f32.gmra.mxu0 %v69
  %v156 = vpop.f32.mrf.mxu0
  %v157 = vadd.f32 %v56, %v156
  %v158 = vpop.f32.mrf.mxu0
  %159 = vdwg.mxu0
  %v160 = vmax.f32 %v142, 0.0
  %v161 = vmax.f32 %v147, 0.0
  %v162 = vmax.f32 %v152, 0.0
  %v163 = vmax.f32 %v157, 0.0
  %v164 = vld [vmem:[%s3] sm:$0xff]
  %v165 = vld [vmem:[%s3 + $0x8] sm:$0xff]
  %v166 = vld [vmem:[%s3 + $0x10] sm:$0xff]
  %v167 = vld [vmem:[%s3 + $0x18] sm:$0xff]
  %v168 = vld [vmem:[%s4] sm:$0xff]
  %v169 = vld [vmem:[%s4 + $0x8] sm:$0xff]
  %v170 = vld [vmem:[%s4 + $0x10] sm:$0xff]
  %v171 = vld [vmem:[%s4 + $0x18] sm:$0xff]
  %173 = vset.pattern.permute.xlu0 0
  %174 = vperm.xlu0 %173, %v168
  %v175 = vpop.permute.xlu0 %174
  %178 = vset.pattern.permute.xlu0 0
  %179 = vperm.xlu0 %178, %v169
  %v180 = vpop.permute.xlu0 %179
  %183 = vset.pattern.permute.xlu0 0
  %184 = vperm.xlu0 %183, %v170
  %v185 = vpop.permute.xlu0 %184
  %188 = vset.pattern.permute.xlu0 0
  %189 = vperm.xlu0 %188, %v171
  %v190 = vpop.permute.xlu0 %189
  %vm192 = vcmask 261120
  %v194 = vsel %vm192, %v164, 0
  %v197 = vsel %vm192, %v165, 0
  %v200 = vsel %vm192, %v166, 0
  %v203 = vsel %vm192, %v167, 0
  %205 = vmatprep.subr.mxu0 0.0
  %206 = vmatpush1.msra.mxu0 0.0
  %207 = vmatprep.subr.mxu0 0.0
  %208 = vmatpush1.msra.mxu0 0.0
  %209 = vmatprep.subr.mxu0 0.0
  %210 = vmatpush1.msra.mxu0 0.0
  %211 = vmatprep.subr.mxu0 0.0
  %212 = vmatpush1.msra.mxu0 0.0
  %213 = vmatprep.subr.mxu0 0.0
  %214 = vmatpush1.msra.mxu0 0.0
  %215 = vmatprep.subr.mxu0 0.0
  %216 = vmatpush1.msra.mxu0 0.0
  %217 = vmatprep.subr.mxu0 0.0
  %218 = vmatpush1.msra.mxu0 0.0
  %219 = vmatprep.subr.mxu0 0.0
  %220 = vmatpush1.msra.mxu0 0.0
  %221 = vmatprep.subr.mxu0 0.0
  %222 = vmatpush1.msra.mxu0 0.0
  %223 = vmatprep.subr.mxu0 0.0
  %224 = vmatpush1.msra.mxu0 0.0
  %225 = vmatprep.subr.mxu0 0.0
  %226 = vmatpush1.msra.mxu0 0.0
  %227 = vmatprep.subr.mxu0 0.0
  %228 = vmatpush1.msra.mxu0 0.0
  %229 = vmatprep.subr.mxu0 0.0
  %230 = vmatpush1.msra.mxu0 %v163
  %231 = vmatprep.subr.mxu0 0.0
  %232 = vmatpush1.msra.mxu0 %v162
  %233 = vmatprep.subr.mxu0 0.0
  %234 = vmatpush1.msra.mxu0 %v161
  %235 = vmatprep.subr.mxu0 0.0
  %236 = vmatpush1.msra.mxu0 %v160
  %237 = vmatprep.subr.mxu0 0.0
  %238 = vmatpush2.msra.mxu0 0.0
  %239 = vmatprep.subr.mxu0 0.0
  %240 = vmatpush2.msra.mxu0 0.0
  %241 = vmatprep.subr.mxu0 0.0
  %242 = vmatpush2.msra.mxu0 0.0
  %243 = vmatprep.subr.mxu0 0.0
  %244 = vmatpush2.msra.mxu0 0.0
  %245 = vmatprep.subr.mxu0 0.0
  %246 = vmatpush2.msra.mxu0 0.0
  %247 = vmatprep.subr.mxu0 0.0
  %248 = vmatpush2.msra.mxu0 0.0
  %249 = vmatprep.subr.mxu0 0.0
  %250 = vmatpush2.msra.mxu0 0.0
  %251 = vmatprep.subr.mxu0 0.0
  %252 = vmatpush2.msra.mxu0 0.0
  %253 = vmatprep.subr.mxu0 0.0
  %254 = vmatpush2.msra.mxu0 0.0
  %255 = vmatprep.subr.mxu0 0.0
  %256 = vmatpush2.msra.mxu0 0.0
  %257 = vmatprep.subr.mxu0 0.0
  %258 = vmatpush2.msra.mxu0 0.0
  %259 = vmatprep.subr.mxu0 0.0
  %260 = vmatpush2.msra.mxu0 0.0
  %261 = vmatprep.subr.mxu0 0.0
  %262 = vmatpush2.msra.mxu0 0.0
  %263 = vmatprep.subr.mxu0 0.0
  %264 = vmatpush2.msra.mxu0 0.0
  %265 = vmatprep.subr.mxu0 0.0
  %266 = vmatpush2.msra.mxu0 0.0
  %267 = vmatprep.subr.mxu0 0.0
  %268 = vmatpush2.msra.mxu0 0.0
  %269 = vmatprep.mubr.f32.mxu0 0.0
  %270 = vmatmul.mubr.f32.gmra.mxu0 %v194
  %v271 = vpop.f32.mrf.mxu0
  %v272 = vadd.f32 %v175, %v271
  %v273 = vpop.f32.mrf.mxu0
  %274 = vmatprep.mubr.f32.mxu0 0.0
  %275 = vmatmul.mubr.f32.gmra.mxu0 %v197
  %v276 = vpop.f32.mrf.mxu0
  %v277 = vadd.f32 %v180, %v276
  %v278 = vpop.f32.mrf.mxu0
  %279 = vmatprep.mubr.f32.mxu0 0.0
  %280 = vmatmul.mubr.f32.gmra.mxu0 %v200
  %v281 = vpop.f32.mrf.mxu0
  %v282 = vadd.f32 %v185, %v281
  %v283 = vpop.f32.mrf.mxu0
  %284 = vmatprep.mubr.f32.mxu0 0.0
  %285 = vmatmul.mubr.f32.gmra.mxu0 %v203
  %v286 = vpop.f32.mrf.mxu0
  %v287 = vadd.f32 %v190, %v286
  %v288 = vpop.f32.mrf.mxu0
  %289 = vdwg.mxu0
  %v290 = vmax.f32 %v272, 0.0
  %v291 = vmax.f32 %v277, 0.0
  %v292 = vmax.f32 %v282, 0.0
  %v293 = vmax.f32 %v287, 0.0
  %v294 = vld [vmem:[%s5] sm:$0xff]
  %v295 = vld [vmem:[%s5 + $0x8] sm:$0xff]
  %v296 = vld [vmem:[%s5 + $0x10] sm:$0xff]
  %v297 = vld [vmem:[%s5 + $0x18] sm:$0xff]
  %299 = vset.pattern.permute.xlu0 0
  %300 = vperm.xlu0 %299, %v294
  %v301 = vpop.permute.xlu0 %300
  %304 = vset.pattern.permute.xlu0 0
  %305 = vperm.xlu0 %304, %v295
  %v306 = vpop.permute.xlu0 %305
  %309 = vset.pattern.permute.xlu0 0
  %310 = vperm.xlu0 %309, %v296
  %v311 = vpop.permute.xlu0 %310
  %314 = vset.pattern.permute.xlu0 0
  %315 = vperm.xlu0 %314, %v297
  %v316 = vpop.permute.xlu0 %315
  %v318 = vmul.f32 %v290, %v301
  %v319 = vmul.f32 %v291, %v306
  %v320 = vmul.f32 %v292, %v311
  %v321 = vmul.f32 %v293, %v316
  %v322 = vadd.f32 %v318, %v319
  %v323 = vadd.f32 %v322, %v320
  %v324 = vadd.f32 %v323, %v321
  %v325 = vrot.slane %v324, 4
  %v326 = vadd.f32 %v324, %v325
  %v327 = vrot.slane %v326, 2
  %v328 = vadd.f32 %v326, %v327
  %v329 = vrot.slane %v328, 1
  %v330 = vadd.f32 %v328, %v329
  %v331 = vld [vmem:[#allocation2] sm:$0x1]
  %333 = vset.pattern.permute.xlu0 0
  %334 = vperm.xlu0 %333, %v331
  %v335 = vpop.permute.xlu0 %334
  %v337 = vlaneseq
  %v338 = vshrl.u32 %v337, 7
  %v339 = vsub.s32 0, %v338
  %v340 = vrot.slane %v335, %v339
  %v341 = vadd.f32 %v330, %v340
  %342 = vst [vmem:[%s7] sm:$0x1] %v341
  // Predicated region
  $region30: #{padded_embedding_forward.1} parent=0 // pred_check
    _
  $region31: #{padded_embedding_forward.1} parent=0 // pred_check_branch
    %344 = sbr.rel (0) target = $region33
  $region32: #{padded_embedding_forward.1} parent=0 // pred_region
    _
  $region33: #{padded_embedding_forward.1} parent=0 // pred_fallthru
    _
  // Predicated region
  $region34: #{padded_embedding_forward.1} parent=0 // pred_check
    _
  $region35: #{padded_embedding_forward.1} parent=0 // pred_check_branch
    %346 = sbr.rel (0) target = $region37
  $region36: #{padded_embedding_forward.1} parent=0 // pred_region
    _
  $region37: #{padded_embedding_forward.1} parent=0 // pred_fallthru
    _

</llo_original>
